<compile_context>
chip_gen: v5e
topology: v5e:2x2
jax: 0.10.0
libtpu: 0.0.40
codegen_flags: <defaults>
</compile_context>

<pallas_src>
import jax
import jax.numpy as jnp
import numpy as np
from jax.experimental import pallas as pl
from jax.experimental.pallas import tpu as pltpu

_VMEM_LIMIT = 32 * 1024 * 1024   # raises v5e's 16 MiB default; safe on v6e/v7x


# --------------------------------------------------------------------------
# Host-side (trace-time) blocking helpers
# --------------------------------------------------------------------------
def _largest_divisor_le(n, cap):
    cap = int(max(1, min(cap, n)))
    for k in range(cap, 0, -1):
        if n % k == 0:
            return k
    return 1


def _largest_tile_multiple_of_128(s, cap_elems):
    cap = int(max(128, min(cap_elems, s)))
    best = 128
    t = 128
    while t <= cap:
        if s % t == 0:
            best = t
        t += 128
    return best


def _pick_blocking(n_samples, C, S_p, itemsize, target_bytes, max_k):
    """Pick (samples_per_block, lanes_per_block) under a per-block byte budget."""
    slab = C * S_p * itemsize
    if slab <= target_bytes:
        # Whole-sample slabs fit: take several consecutive samples per block.
        k = _largest_divisor_le(n_samples, min(max_k, max(1, target_bytes // slab)))
        return k, S_p                       # full-extent lane dim (always legal)
    if S_p % 128 != 0:                      # defensive; the wrapper pads first
        return 1, S_p
    cap_elems = max(128, target_bytes // (C * itemsize))
    return 1, _largest_tile_multiple_of_128(S_p, cap_elems)


# --------------------------------------------------------------------------
# Kernels
# --------------------------------------------------------------------------
def _make_stats_kernel(kb):
    def kernel(x_ref, psum_ref, psq_ref, acc_s, acc_q):
        b = pl.program_id(2)
        s = pl.program_id(3)

        @pl.when(jnp.logical_and(b == 0, s == 0))
        def _init():
            acc_s[...] = jnp.zeros_like(acc_s)
            acc_q[...] = jnp.zeros_like(acc_q)

        # Lane-dense running accumulators: pure elementwise VPU adds per step
        # (no per-step cross-lane XLU reduce, no narrow masked stores).
        for i in range(kb):                                   # static unroll
            xi = x_ref[i, 0].astype(jnp.float32)              # (C, tile_s)
            acc_s[...] += xi
            acc_q[...] += xi * xi

        @pl.when(jnp.logical_and(b == pl.num_programs(2) - 1,
                                 s == pl.num_programs(3) - 1))
        def _finalize():
            # Single cross-lane reduction per (split, domain) group.
            psum_ref[0, 0] = jnp.sum(acc_s[...], axis=-1, keepdims=True)  # (C, 1)
            psq_ref[0, 0] = jnp.sum(acc_q[...], axis=-1, keepdims=True)

    return kernel


def _make_norm_kernel(compute_dtype):
    def kernel(x_ref, scale_ref, shift_ref, o_ref):
        x = x_ref[...].astype(compute_dtype)                  # (k, C, tile_s)
        o_ref[...] = (x * scale_ref[...] + shift_ref[...]).astype(o_ref.dtype)
    return kernel


# --------------------------------------------------------------------------
# Wrapper
# --------------------------------------------------------------------------
def dial_batchnorm3d_train(x, gamma, beta, num_domains, eps=1e-5, *,
                           pass1_block_bytes=2 << 20,
                           pass2_block_bytes=3 << 20,
                           fast_bf16_math=True):
    """x: (N, C, D, H, W), N = B * num_domains. Returns same shape/dtype."""
    N, C, D, H, W = x.shape
    assert N % num_domains == 0, "batch must be a multiple of num_domains"
    B = N // num_domains
    S = D * H * W
    itemsize = jnp.dtype(x.dtype).itemsize

    # ---- blocking decisions (host-side, trace time) --------------------------
    pad = (C * S * itemsize > pass1_block_bytes) and (S % 128 != 0)
    S_p = (-(-S // 128)) * 128 if pad else S

    xr = x.reshape(N, C, S)                 # free reshape, no transpose
    if pad:
        # zero padding is stats-neutral (sums unaffected; count uses real S)
        xr = jnp.pad(xr, ((0, 0), (0, 0), (0, S_p - S)))

    nsplit = 2 if (B % 2 == 0 and B >= 2) else 1       # core-parallel B split
    Rb = B // nsplit

    kb, ts1 = _pick_blocking(Rb, C, S_p, itemsize, pass1_block_bytes, max_k=128)
    k2, ts2 = _pick_blocking(N, C, S_p, itemsize, pass2_block_bytes, max_k=N)
    nb, ns1, ns2 = Rb // kb, S_p // ts1, S_p // ts2

    x4 = xr.reshape(B, num_domains, C, S_p)            # free reshape

    # ---- pass 1: per-(split, domain, channel) partial sum / sum(x^2) --------
    psum, psq = pl.pallas_call(
        _make_stats_kernel(kb),
        out_shape=(
            jax.ShapeDtypeStruct((nsplit, num_domains, C, 1), jnp.float32),
            jax.ShapeDtypeStruct((nsplit, num_domains, C, 1), jnp.float32),
        ),
        grid_spec=pltpu.PrefetchScalarGridSpec(
            num_scalar_prefetch=0,
            grid=(nsplit, num_domains, nb, ns1),
            in_specs=[
                pl.BlockSpec((kb, 1, C, ts1),
                             lambda p, d, b, s: (p * nb + b, d, 0, s)),
            ],
            out_specs=[
                pl.BlockSpec((1, 1, C, 1), lambda p, d, b, s: (p, d, 0, 0)),
                pl.BlockSpec((1, 1, C, 1), lambda p, d, b, s: (p, d, 0, 0)),
            ],
            scratch_shapes=[
                pltpu.VMEM((C, ts1), jnp.float32),
                pltpu.VMEM((C, ts1), jnp.float32),
            ],
        ),
        compiler_params=pltpu.CompilerParams(
            dimension_semantics=("parallel", "parallel", "arbitrary", "arbitrary"),
            vmem_limit_bytes=_VMEM_LIMIT,
        ),
        cost_estimate=pl.CostEstimate(
            flops=3 * N * C * S_p, transcendentals=0,
            bytes_accessed=N * C * S_p * itemsize + 8 * nsplit * num_domains * C),
    )(x4)

    # ---- tiny XLA epilogue: fold into per-sample scale / shift ---------------
    count = float(B * S)                                 # real (unpadded) count
    tot_s = jnp.sum(psum[..., 0], axis=0)                # (num_domains, C)
    tot_q = jnp.sum(psq[..., 0], axis=0)
    mean = tot_s / count
    var = jnp.maximum(tot_q / count - mean * mean, 0.0)
    scale_dc = gamma[None, :].astype(jnp.float32) * jax.lax.rsqrt(var + eps)
    shift_dc = beta[None, :].astype(jnp.float32) - mean * scale_dc

    use_bf16 = bool(fast_bf16_math) and x.dtype == jnp.bfloat16
    compute_dtype = jnp.bfloat16 if use_bf16 else jnp.float32
    dom = jnp.arange(N, dtype=jnp.int32) % num_domains
    scale_n = scale_dc.astype(compute_dtype)[dom][:, :, None]    # (N, C, 1)
    shift_n = shift_dc.astype(compute_dtype)[dom][:, :, None]    # (N, C, 1)

    # ---- pass 2: streaming y = x * scale + shift, samples in HBM order -------
    out = pl.pallas_call(
        _make_norm_kernel(compute_dtype),
        out_shape=jax.ShapeDtypeStruct((N, C, S_p), x.dtype),
        grid_spec=pltpu.PrefetchScalarGridSpec(
            num_scalar_prefetch=0,
            grid=(N // k2, ns2),
            in_specs=[
                pl.BlockSpec((k2, C, ts2), lambda n, s: (n, 0, s)),
                pl.BlockSpec((k2, C, 1), lambda n, s: (n, 0, 0)),
                pl.BlockSpec((k2, C, 1), lambda n, s: (n, 0, 0)),
            ],
            out_specs=pl.BlockSpec((k2, C, ts2), lambda n, s: (n, 0, s)),
        ),
        compiler_params=pltpu.CompilerParams(
            dimension_semantics=("parallel", "parallel"),
            vmem_limit_bytes=_VMEM_LIMIT,
        ),
        cost_estimate=pl.CostEstimate(
            flops=2 * N * C * S_p, transcendentals=0,
            bytes_accessed=2 * N * C * S_p * itemsize),
    )(xr, scale_n, shift_n)

    if pad:
        out = out[:, :, :S]
    return out.reshape(N, C, D, H, W)


# --------------------------------------------------------------------------
# Pure-JAX reference and self-test
# --------------------------------------------------------------------------
def _reference(x, gamma, beta, num_domains, eps=1e-5):
    N, C, D, H, W = x.shape
    B = N // num_domains
    xr = x.reshape(B, num_domains, C, D, H, W).transpose(1, 0, 2, 3, 4, 5)
    outs = []
    for d in range(num_domains):
        xd = xr[d]                                       # (B, C, D, H, W)
        mean = jnp.mean(xd, axis=(0, 2, 3, 4), keepdims=True)
        var = jnp.mean((xd - mean) ** 2, axis=(0, 2, 3, 4), keepdims=True)
        outs.append((xd - mean) / jnp.sqrt(var + eps))
    y = jnp.stack(outs, axis=1).reshape(N, C, D, H, W)
    return y * gamma[None, :, None, None, None] + beta[None, :, None, None, None]


if __name__ == "__main__":
    num_domains = 2
    B_per_domain = 4
    N = num_domains * B_per_domain   # 8
    C, D, H, W = 4, 4, 8, 8          # S = 256

    x = jax.random.normal(jax.random.PRNGKey(0), (N, C, D, H, W),
                          dtype=jnp.float32) * 2.0 + 0.5
    gamma = jnp.ones((C,), jnp.float32) * 1.5
    beta = jnp.full((C,), 0.25, jnp.float32)

    y_ref = _reference(x, gamma, beta, num_domains)

    # Default (large-block) path: multi-sample pass-2 blocks, unrolled kb in pass 1.
    y = jax.block_until_ready(dial_batchnorm3d_train(x, gamma, beta, num_domains))
    np.testing.assert_allclose(np.asarray(y), np.asarray(y_ref),
                               rtol=5e-5, atol=5e-5)

    # Forced-small tiles: exercises multi-step accumulation over (b, s) in pass 1
    # and tiled-S streaming in pass 2.
    y2 = jax.block_until_ready(
        dial_batchnorm3d_train(x, gamma, beta, num_domains,
                               pass1_block_bytes=C * 128 * 4,
                               pass2_block_bytes=C * 128 * 4))
    np.testing.assert_allclose(np.asarray(y2), np.asarray(y_ref),
                               rtol=5e-5, atol=5e-5)

    # bf16 fast-math path (bf16 VALUs on v6e/v7x); looser tolerance.
    xb = x.astype(jnp.bfloat16)
    yb = jax.block_until_ready(dial_batchnorm3d_train(xb, gamma, beta, num_domains))
    yb_ref = _reference(xb.astype(jnp.float32), gamma, beta, num_domains)
    np.testing.assert_allclose(np.asarray(yb, dtype=np.float32), np.asarray(yb_ref),
                               rtol=5e-2, atol=5e-2)

    print("KERNEL_OK")
</pallas_src>

<mosaic_0001>
module attributes {stable_mosaic.version = 11 : i64} {
  func.func @kernel(%arg0: i32, %arg1: i32, %arg2: i32, %arg3: i32, %arg4: memref<2x1x4x256xf32, #tpu.memory_space<vmem>>, %arg5: memref<1x1x4x1xf32, #tpu.memory_space<vmem>>, %arg6: memref<1x1x4x1xf32, #tpu.memory_space<vmem>>, %arg7: memref<4x256xf32, #tpu.memory_space<vmem>>, %arg8: memref<4x256xf32, #tpu.memory_space<vmem>>) attributes {dimension_semantics = [#tpu.dimension_semantics<parallel>, #tpu.dimension_semantics<parallel>, #tpu.dimension_semantics<arbitrary>, #tpu.dimension_semantics<arbitrary>], iteration_bounds = array<i64: 2, 2, 1, 1>, scalar_prefetch = 0 : i64, scratch_operands = 2 : i64, tpu.core_type = #tpu.core_type<tc>, window_params = [{transform_indices = @transform_0, window_bounds = array<i64: 2, 1, 4, 256>}, {transform_indices = @transform_1, window_bounds = array<i64: 1, 1, 4, 1>}, {transform_indices = @transform_2, window_bounds = array<i64: 1, 1, 4, 1>}]} {
    %c0_i32 = arith.constant 0 : i32
    %0 = arith.cmpi eq, %arg2, %c0_i32 : i32
    %c0_i32_0 = arith.constant 0 : i32
    %1 = arith.cmpi eq, %arg3, %c0_i32_0 : i32
    %2 = arith.andi %0, %1 : i1
    %3 = arith.extui %2 : i1 to i32
    %c0_i32_1 = arith.constant 0 : i32
    %4 = arith.cmpi ne, %3, %c0_i32_1 : i32
    scf.if %4 {
      %cst = arith.constant 0.000000e+00 : f32
      %28 = vector.broadcast %cst : f32 to vector<4x256xf32>
      %c0_27 = arith.constant 0 : index
      %c0_28 = arith.constant 0 : index
      %29 = vector.load %arg7[%c0_27, %c0_28] : memref<4x256xf32, #tpu.memory_space<vmem>>, vector<4x256xf32>
      tpu.vector_store %arg7[%c0_27, %c0_28], %28 {strides = array<i32>} : memref<4x256xf32, #tpu.memory_space<vmem>>, vector<4x256xf32>,
      %cst_29 = arith.constant 0.000000e+00 : f32
      %30 = vector.broadcast %cst_29 : f32 to vector<4x256xf32>
      %c0_30 = arith.constant 0 : index
      %c0_31 = arith.constant 0 : index
      %31 = vector.load %arg8[%c0_30, %c0_31] : memref<4x256xf32, #tpu.memory_space<vmem>>, vector<4x256xf32>
      tpu.vector_store %arg8[%c0_30, %c0_31], %30 {strides = array<i32>} : memref<4x256xf32, #tpu.memory_space<vmem>>, vector<4x256xf32>,
    } else {
    }
    %c0 = arith.constant 0 : index
    %c0_2 = arith.constant 0 : index
    %c0_3 = arith.constant 0 : index
    %c0_4 = arith.constant 0 : index
    %5 = vector.load %arg4[%c0, %c0_2, %c0_3, %c0_4] : memref<2x1x4x256xf32, #tpu.memory_space<vmem>>, vector<1x1x4x256xf32>
    %6 = vector.shape_cast %5 : vector<1x1x4x256xf32> to vector<4x256xf32>
    %c0_5 = arith.constant 0 : index
    %c0_6 = arith.constant 0 : index
    %7 = vector.load %arg7[%c0_5, %c0_6] : memref<4x256xf32, #tpu.memory_space<vmem>>, vector<4x256xf32>
    %8 = arith.addf %7, %6 : vector<4x256xf32>
    %c0_7 = arith.constant 0 : index
    %c0_8 = arith.constant 0 : index
    %9 = vector.load %arg7[%c0_7, %c0_8] : memref<4x256xf32, #tpu.memory_space<vmem>>, vector<4x256xf32>
    tpu.vector_store %arg7[%c0_7, %c0_8], %8 {strides = array<i32>} : memref<4x256xf32, #tpu.memory_space<vmem>>, vector<4x256xf32>,
    %c0_9 = arith.constant 0 : index
    %c0_10 = arith.constant 0 : index
    %10 = vector.load %arg8[%c0_9, %c0_10] : memref<4x256xf32, #tpu.memory_space<vmem>>, vector<4x256xf32>
    %11 = arith.mulf %6, %6 : vector<4x256xf32>
    %12 = arith.addf %10, %11 : vector<4x256xf32>
    %c0_11 = arith.constant 0 : index
    %c0_12 = arith.constant 0 : index
    %13 = vector.load %arg8[%c0_11, %c0_12] : memref<4x256xf32, #tpu.memory_space<vmem>>, vector<4x256xf32>
    tpu.vector_store %arg8[%c0_11, %c0_12], %12 {strides = array<i32>} : memref<4x256xf32, #tpu.memory_space<vmem>>, vector<4x256xf32>,
    %c1 = arith.constant 1 : index
    %c0_13 = arith.constant 0 : index
    %c0_14 = arith.constant 0 : index
    %c0_15 = arith.constant 0 : index
    %14 = vector.load %arg4[%c1, %c0_13, %c0_14, %c0_15] : memref<2x1x4x256xf32, #tpu.memory_space<vmem>>, vector<1x1x4x256xf32>
    %15 = vector.shape_cast %14 : vector<1x1x4x256xf32> to vector<4x256xf32>
    %c0_16 = arith.constant 0 : index
    %c0_17 = arith.constant 0 : index
    %16 = vector.load %arg7[%c0_16, %c0_17] : memref<4x256xf32, #tpu.memory_space<vmem>>, vector<4x256xf32>
    %17 = arith.addf %16, %15 : vector<4x256xf32>
    %c0_18 = arith.constant 0 : index
    %c0_19 = arith.constant 0 : index
    %18 = vector.load %arg7[%c0_18, %c0_19] : memref<4x256xf32, #tpu.memory_space<vmem>>, vector<4x256xf32>
    tpu.vector_store %arg7[%c0_18, %c0_19], %17 {strides = array<i32>} : memref<4x256xf32, #tpu.memory_space<vmem>>, vector<4x256xf32>,
    %c0_20 = arith.constant 0 : index
    %c0_21 = arith.constant 0 : index
    %19 = vector.load %arg8[%c0_20, %c0_21] : memref<4x256xf32, #tpu.memory_space<vmem>>, vector<4x256xf32>
    %20 = arith.mulf %15, %15 : vector<4x256xf32>
    %21 = arith.addf %19, %20 : vector<4x256xf32>
    %c0_22 = arith.constant 0 : index
    %c0_23 = arith.constant 0 : index
    %22 = vector.load %arg8[%c0_22, %c0_23] : memref<4x256xf32, #tpu.memory_space<vmem>>, vector<4x256xf32>
    tpu.vector_store %arg8[%c0_22, %c0_23], %21 {strides = array<i32>} : memref<4x256xf32, #tpu.memory_space<vmem>>, vector<4x256xf32>,
    %c0_i32_24 = arith.constant 0 : i32
    %23 = arith.cmpi eq, %arg2, %c0_i32_24 : i32
    %c0_i32_25 = arith.constant 0 : i32
    %24 = arith.cmpi eq, %arg3, %c0_i32_25 : i32
    %25 = arith.andi %23, %24 : i1
    %26 = arith.extui %25 : i1 to i32
    %c0_i32_26 = arith.constant 0 : i32
    %27 = arith.cmpi ne, %26, %c0_i32_26 : i32
    scf.if %27 {
      %c0_27 = arith.constant 0 : index
      %c0_28 = arith.constant 0 : index
      %28 = vector.load %arg7[%c0_27, %c0_28] : memref<4x256xf32, #tpu.memory_space<vmem>>, vector<4x256xf32>
      %cst = arith.constant dense<0.000000e+00> : vector<4xf32>
      %29 = vector.multi_reduction <add>, %28, %cst [1] : vector<4x256xf32> to vector<4xf32>
      %30 = vector.shape_cast %29 : vector<4xf32> to vector<4x1xf32>
      %c0_29 = arith.constant 0 : index
      %c0_30 = arith.constant 0 : index
      %c0_31 = arith.constant 0 : index
      %c0_32 = arith.constant 0 : index
      %31 = vector.load %arg5[%c0_29, %c0_30, %c0_31, %c0_32] : memref<1x1x4x1xf32, #tpu.memory_space<vmem>>, vector<1x1x4x1xf32>
      %32 = vector.shape_cast %31 : vector<1x1x4x1xf32> to vector<4x1xf32>
      %33 = vector.shape_cast %30 : vector<4x1xf32> to vector<1x1x4x1xf32>
      tpu.vector_store %arg5[%c0_29, %c0_30, %c0_31, %c0_32], %33 {strides = array<i32>} : memref<1x1x4x1xf32, #tpu.memory_space<vmem>>, vector<1x1x4x1xf32>,
      %c0_33 = arith.constant 0 : index
      %c0_34 = arith.constant 0 : index
      %34 = vector.load %arg8[%c0_33, %c0_34] : memref<4x256xf32, #tpu.memory_space<vmem>>, vector<4x256xf32>
      %cst_35 = arith.constant dense<0.000000e+00> : vector<4xf32>
      %35 = vector.multi_reduction <add>, %34, %cst_35 [1] : vector<4x256xf32> to vector<4xf32>
      %36 = vector.shape_cast %35 : vector<4xf32> to vector<4x1xf32>
      %c0_36 = arith.constant 0 : index
      %c0_37 = arith.constant 0 : index
      %c0_38 = arith.constant 0 : index
      %c0_39 = arith.constant 0 : index
      %37 = vector.load %arg6[%c0_36, %c0_37, %c0_38, %c0_39] : memref<1x1x4x1xf32, #tpu.memory_space<vmem>>, vector<1x1x4x1xf32>
      %38 = vector.shape_cast %37 : vector<1x1x4x1xf32> to vector<4x1xf32>
      %39 = vector.shape_cast %36 : vector<4x1xf32> to vector<1x1x4x1xf32>
      tpu.vector_store %arg6[%c0_36, %c0_37, %c0_38, %c0_39], %39 {strides = array<i32>} : memref<1x1x4x1xf32, #tpu.memory_space<vmem>>, vector<1x1x4x1xf32>,
    } else {
    }
    return
  }
  func.func @transform_0(%arg0: i32, %arg1: i32, %arg2: i32, %arg3: i32) -> (i32, i32, i32, i32) {
    %c1_i32 = arith.constant 1 : i32
    %0 = arith.muli %arg0, %c1_i32 : i32
    %1 = arith.addi %0, %arg2 : i32
    %c0_i32 = arith.constant 0 : i32
    %c0_i32_0 = arith.constant 0 : i32
    return %1, %arg1, %c0_i32, %arg3 : i32, i32, i32, i32
  }
  func.func @transform_1(%arg0: i32, %arg1: i32, %arg2: i32, %arg3: i32) -> (i32, i32, i32, i32) {
    %c0_i32 = arith.constant 0 : i32
    %c0_i32_0 = arith.constant 0 : i32
    %c0_i32_1 = arith.constant 0 : i32
    return %arg0, %arg1, %c0_i32, %c0_i32_0 : i32, i32, i32, i32
  }
  func.func @transform_2(%arg0: i32, %arg1: i32, %arg2: i32, %arg3: i32) -> (i32, i32, i32, i32) {
    %c0_i32 = arith.constant 0 : i32
    %c0_i32_0 = arith.constant 0 : i32
    %c0_i32_1 = arith.constant 0 : i32
    return %arg0, %arg1, %c0_i32, %c0_i32_0 : i32, i32, i32, i32
  }
}

</mosaic_0001>

<llo_original>
// kernel: tpu_custom_call.1
$region0: #{tpu_custom_call.1}
  #allocation0 [shape = 'u32[]', space=smem, size = 0x4, offset = 0x4, fixed_abs, tag = 'smem constant byte address 0x4 - core index']
  #allocation1 [shape = 'u32[72,128]{1,0:T(1,128)}', space=vmem, size = 0x9000, scoped, tag = 'internal scratch']
  #allocation2 [shape = 'f32[4,256]{1,0:T(4,128)}', space=vmem, size = 0x1000, scoped, tag = 'scratch operand']
  #allocation3 [shape = 'f32[4,256]{1,0:T(4,128)}', space=vmem, size = 0x1000, scoped, tag = 'scratch operand']
  %s0 = inlined_call_operand.hbm [shape: f32[4,2,4,256], index: 0, kind: input, shape index: {}]
  %s1 = inlined_call_operand.vmem [shape: f32[2,2,4,1], index: 1, kind: output, shape index: {0}]
  %s2 = inlined_call_operand.vmem [shape: f32[2,2,4,1], index: 2, kind: output, shape index: {1}]
  %3 = xla_tuple %s1, %s2
  %s4 = sld [smem:[#allocation0]]
  $region57: #{tpu_custom_call.1} parent=0
    _
  %s6 = ssub.s32 1, %s4
  %s7 = scalar_select 0, %s6, %s4
  $region1: #{tpu_custom_call.1} parent=0
    #allocation4 [shape = 'u8[16384]{0}', space=vmem, size = 0x4000, scoped, tag = 'input window, operand 0']
    #allocation5 [shape = 's32[2]{0}', space=sflag, size = 0x8, scoped, tag = 'scoped memory for tpu_custom_call.1']
    %8 = vsyncpa [#allocation5], 0
    %s9 = scalar_lea.sflag [#allocation5], 1
    %10 = vsyncpa %s9, 0
    loop: start=0, step=1, limit=6
    $region2: #{tpu_custom_call.1} parent=1 // loop_pre_header
      _
    $region3: #{tpu_custom_call.1} parent=1 // loop_header
      %s12 = sphi 0, %s16
      %p13 = scmp.ge.s32.totalorder %s12, 6
      %s19 = sphi 0, %s45
      %s20 = sphi 0, %s41
      %s21 = sphi 0, %s37
      %s22 = sphi 0, %s33
      %s23 = sphi 0, %s19
      %s24 = sphi 0, %s20
      %s25 = sphi 0, %s21
      %s26 = sphi 0, %s22
      %s27 = sphi 0, %s23
      %s28 = sphi 0, %s24
      %s29 = sphi 0, %s25
      %s30 = sphi 0, %s26
      %s54 = sphi 0, %s56
      %s57 = sphi 0, %s54
      %s58 = sphi 0, %s57
      %s74 = sphi 0, %s58
      %s82 = sphi 0, %s84
      %s85 = sphi 0, %s82
      %s86 = sphi 0, %s85
      %s102 = sphi 0, %s86
      %s110 = sphi 0, %s112
      %s113 = sphi 0, %s110
      %s114 = sphi 0, %s113
      %s130 = sphi 0, %s114
    $region4: #{tpu_custom_call.1} parent=1 // loop_header_branch
      %15 = sbr.rel (%p13) target = $region8
    $region5: #{tpu_custom_call.1} parent=1 // loop_body
      %s17 = ssub.s32 %s12, 1
      %s18 = ssub.s32 %s12, 2
      %s31 = sadd.s32 1, %s22
      %p32 = scmp.ge.s32.totalorder %s31, 1
      %s33 = scalar_select %p32, 0, %s31
      %s34 = sadd.s32 1, %s21
      %s35 = scalar_select %p32, %s34, %s21
      %p36 = scmp.ge.s32.totalorder %s35, 1
      %s37 = scalar_select %p36, 0, %s35
      %s38 = sadd.s32 1, %s20
      %s39 = scalar_select %p36, %s38, %s20
      %p40 = scmp.ge.s32.totalorder %s39, 2
      %s41 = scalar_select %p40, 0, %s39
      %s42 = sadd.s32 1, %s19
      %s43 = scalar_select %p40, %s42, %s19
      %p44 = scmp.ge.s32.totalorder %s43, 2
      %s45 = scalar_select %p44, 0, %s43
      %s46 = sadd.s32 %s19, %s21
      %s47 = sadd.s32 %s45, %s37
      %s48 = ssub.s32 %s46, %s47
      %s49 = ssub.s32 %s20, %s41
      %s50 = sor.u32 %s48, %s49
      %s51 = ssub.s32 %s22, %s33
      %s52 = sor.u32 %s50, %s51
      %p53 = scmp.eq.s32.totalorder %s52, 0
      %s55 = sadd.s32 %s54, 1
      %s56 = scalar_select %p53, %s54, %s55
      %p59 = pneg %p53
      %p60 = scmp.eq.s32.totalorder %s12, 3
      %p61 = por %p59, %p60
      %p62 = scmp.ne.s32.totalorder %s54, %s57
      %p63 = scmp.eq.s32.totalorder %s12, 0
      %p64 = por %p62, %p63
      %p65 = scmp.ne.s32.totalorder %s54, %s57
      %p66 = scmp.eq.s32.totalorder %s17, 3
      %p67 = por %p65, %p66
      %p68 = scmp.ne.s32.totalorder %s57, %s58
      %p69 = scmp.eq.s32.totalorder %s17, 0
      %p70 = por %p68, %p69
      %p71 = scmp.ne.s32.totalorder %s57, %s58
      %p72 = scmp.eq.s32.totalorder %s18, 3
      %p73 = por %p71, %p72
      %p75 = scmp.ne.s32.totalorder %s58, %s74
      %p76 = scmp.eq.s32.totalorder %s18, 0
      %p77 = por %p75, %p76
      %s78 = ssub.s32 %s19, %s45
      %s79 = ssub.s32 %s20, %s41
      %s80 = sor.u32 %s78, %s79
      %p81 = scmp.eq.s32.totalorder %s80, 0
      %s83 = sadd.s32 %s82, 1
      %s84 = scalar_select %p81, %s82, %s83
      %p87 = pneg %p81
      %p88 = scmp.eq.s32.totalorder %s12, 3
      %p89 = por %p87, %p88
      %p90 = scmp.ne.s32.totalorder %s82, %s85
      %p91 = scmp.eq.s32.totalorder %s12, 0
      %p92 = por %p90, %p91
      %p93 = scmp.ne.s32.totalorder %s82, %s85
      %p94 = scmp.eq.s32.totalorder %s17, 3
      %p95 = por %p93, %p94
      %p96 = scmp.ne.s32.totalorder %s85, %s86
      %p97 = scmp.eq.s32.totalorder %s17, 0
      %p98 = por %p96, %p97
      %p99 = scmp.ne.s32.totalorder %s85, %s86
      %p100 = scmp.eq.s32.totalorder %s18, 3
      %p101 = por %p99, %p100
      %p103 = scmp.ne.s32.totalorder %s86, %s102
      %p104 = scmp.eq.s32.totalorder %s18, 0
      %p105 = por %p103, %p104
      %s106 = ssub.s32 %s19, %s45
      %s107 = ssub.s32 %s20, %s41
      %s108 = sor.u32 %s106, %s107
      %p109 = scmp.eq.s32.totalorder %s108, 0
      %s111 = sadd.s32 %s110, 1
      %s112 = scalar_select %p109, %s110, %s111
      %p115 = pneg %p109
      %p116 = scmp.eq.s32.totalorder %s12, 3
      %p117 = por %p115, %p116
      %p118 = scmp.ne.s32.totalorder %s110, %s113
      %p119 = scmp.eq.s32.totalorder %s12, 0
      %p120 = por %p118, %p119
      %p121 = scmp.ne.s32.totalorder %s110, %s113
      %p122 = scmp.eq.s32.totalorder %s17, 3
      %p123 = por %p121, %p122
      %p124 = scmp.ne.s32.totalorder %s113, %s114
      %p125 = scmp.eq.s32.totalorder %s17, 0
      %p126 = por %p124, %p125
      %p127 = scmp.ne.s32.totalorder %s113, %s114
      %p128 = scmp.eq.s32.totalorder %s18, 3
      %p129 = por %p127, %p128
      %p131 = scmp.ne.s32.totalorder %s114, %s130
      %p132 = scmp.eq.s32.totalorder %s18, 0
      %p133 = por %p131, %p132
      %p134 = scmp.le.s32.totalorder 1, %s12
      %p135 = scmp.lt.s32.totalorder %s12, 5
      %p136 = pnand %p134, %p135
      %p137 = pneg %p136
      // Predicated region
      $region9: #{tpu_custom_call.1} parent=5 // pred_check
        _
      $region10: #{tpu_custom_call.1} parent=5 // pred_check_branch
        %139 = sbr.rel (%p136) target = $region12
      $region11: #{tpu_custom_call.1} parent=5 // pred_region
        %s140 = ssub.s32 %s12, 1
      $region12: #{tpu_custom_call.1} parent=5 // pred_fallthru
        _
      %p141 = scmp.lt.s32.totalorder %s12, 4
      // Predicated region
      $region13: #{tpu_custom_call.1} parent=5 // pred_check
        %p142 = pneg %p141
      $region14: #{tpu_custom_call.1} parent=5 // pred_check_branch
        %144 = sbr.rel (%p142) target = $region16
      $region15: #{tpu_custom_call.1} parent=5 // pred_region
        // Predicated region
        $region17: #{tpu_custom_call.1} parent=15 // pred_check
          %p145 = pneg %p64
        $region18: #{tpu_custom_call.1} parent=15 // pred_check_branch
          %147 = sbr.rel (%p145) target = $region20
        $region19: #{tpu_custom_call.1} parent=15 // pred_region
          %s148 = sand.u32 %s54, 1
          %s149 = scalar_lea.sflag [#allocation5], %s148
          %s150 = sand.u32 %s54, 1
          %s151 = smul.addr %s150, 16
          %s152 = scalar_lea.vmem [#allocation4], %s151
          %s153 = sadd.s32 %s19, %s21
          %s154 = smul.u32 2, %s153
          %s155 = smul.u32 2, %s22
          %157 = vsyncadd %s149, 0
          %s158 = smul.addr %s20, 2
          %s159 = sadd.s32 %s155, %s158
          %s160 = smul.addr %s154, 4
          %s161 = sadd.s32 %s159, %s160
          %s162 = smul.addr %s161, 4
          %s163 = scalar_lea.hbm %s0, %s162
          %s164 = sshll.u32 %s163, 4
          %s165 = int_to_ptr.hbm [resolvable:$true] %s164
          %s166 = sshll.u32 %s152, 4
          %s167 = int_to_ptr.vmem [resolvable:$true] %s166
          %172 = dma.hbm_to_vmem [thread:$0]  %s165, 256, %s167, %s149, 256, 128, 8
        $region20: #{tpu_custom_call.1} parent=15 // pred_fallthru
          _
      $region16: #{tpu_custom_call.1} parent=5 // pred_fallthru
        _
      %p173 = scmp.le.s32.totalorder 1, %s12
      %p174 = scmp.lt.s32.totalorder %s12, 5
      %p175 = pnand %p173, %p174
      %p176 = pneg %p175
      // Predicated region
      $region21: #{tpu_custom_call.1} parent=5 // pred_check
        _
      $region22: #{tpu_custom_call.1} parent=5 // pred_check_branch
        %178 = sbr.rel (%p175) target = $region24
      $region23: #{tpu_custom_call.1} parent=5 // pred_region
        %s179 = ssub.s32 %s12, 1
        %s180 = sand.u32 %s57, 1
        %s181 = scalar_lea.sflag [#allocation5], %s180
        %s182 = sand.u32 %s57, 1
        %s183 = smul.addr %s182, 16
        %s184 = scalar_lea.vmem [#allocation4], %s183
        // Predicated region
        $region25: #{tpu_custom_call.1} parent=23 // pred_check
          %p185 = pneg %p70
        $region26: #{tpu_custom_call.1} parent=23 // pred_check_branch
          %187 = sbr.rel (%p185) target = $region28
        $region27: #{tpu_custom_call.1} parent=23 // pred_region
          %189 = dma.done %s181, 256
        $region28: #{tpu_custom_call.1} parent=23 // pred_fallthru
          _
        %s190 = sand.u32 %s57, 1
        %s191 = scalar_lea.sflag [#allocation5], %s190
        %s192 = sand.u32 %s57, 1
        %s193 = smul.addr %s192, 16
        %s194 = scalar_lea.vmem [#allocation4], %s193
        %p195 = pneg %p70
        %p196 = pneg %p67
        %p197 = pneg %p98
        %p198 = pneg %p95
        %p199 = scmp.lt.s32.totalorder %s23, 1
        %s200 = scalar_select %p199, %s23, 1
        %p201 = scmp.lt.s32.totalorder %s24, 1
        %s202 = scalar_select %p201, %s24, 1
        %s203 = smul.addr %s200, 2
        %s204 = sadd.s32 %s202, %s203
        %s205 = smul.addr %s204, 4
        %s206 = scalar_lea.vmem %s1, %s205
        %p207 = pneg %p126
        %p208 = pneg %p123
        %p209 = scmp.lt.s32.totalorder %s23, 1
        %s210 = scalar_select %p209, %s23, 1
        %p211 = scmp.lt.s32.totalorder %s24, 1
        %s212 = scalar_select %p211, %s24, 1
        %s213 = smul.addr %s210, 2
        %s214 = sadd.s32 %s212, %s213
        %s215 = smul.addr %s214, 4
        %s216 = scalar_lea.vmem %s2, %s215
        %s217 = sadd.s32 %s23, %s25
        %s218 = smul.u32 2, %s217
        %s219 = smul.u32 2, %s26
        %p220 = scmp.lt.s32.totalorder %s23, 1
        %s221 = scalar_select %p220, %s23, 1
        %p222 = scmp.lt.s32.totalorder %s24, 1
        %s223 = scalar_select %p222, %s24, 1
        %s224 = smul.addr %s221, 2
        %s225 = sadd.s32 %s223, %s224
        %s226 = smul.addr %s225, 4
        %s227 = scalar_lea.vmem %s1, %s226
        %p228 = scmp.lt.s32.totalorder %s23, 1
        %s229 = scalar_select %p228, %s23, 1
        %p230 = scmp.lt.s32.totalorder %s24, 1
        %s231 = scalar_select %p230, %s24, 1
        %s232 = smul.addr %s229, 2
        %s233 = sadd.s32 %s231, %s232
        %s234 = smul.addr %s233, 4
        %s235 = scalar_lea.vmem %s2, %s234
        %p236 = scmp.eq.s32.totalorder %s25, 0
        %p237 = scmp.eq.s32.totalorder %s26, 0
        %p238 = pnand %p236, %p237
        %p239 = pneg %p238
        // Predicated region
        $region29: #{tpu_custom_call.1} parent=23 // pred_check
          _
        $region30: #{tpu_custom_call.1} parent=23 // pred_check_branch
          %241 = sbr.rel (%p238) target = $region32
        $region31: #{tpu_custom_call.1} parent=23 // pred_region
          %242 = vst [vmem:[#allocation2] sm:$0xff] 0.0
          %243 = vst [vmem:[#allocation3] sm:$0xff] 0.0
        $region32: #{tpu_custom_call.1} parent=23 // pred_fallthru
          _
        %v244 = vld [vmem:[%s184] sm:$0xff]
        %v245 = vld [vmem:[#allocation2] sm:$0xff]
        %v246 = vadd.f32 %v245, %v244
        %247 = vst [vmem:[#allocation2] sm:$0xff] %v246
        %v248 = vld [vmem:[#allocation3] sm:$0xff]
        %v249 = vmul.f32 %v244, %v244
        %v250 = vadd.f32 %v248, %v249
        %251 = vst [vmem:[#allocation3] sm:$0xff] %v250
        %s252 = scalar_lea.vmem %s184, 8 [#allocation4]
        %v253 = vld [vmem:[%s252] sm:$0xff]
        %v254 = vld [vmem:[#allocation2] sm:$0xff]
        %v255 = vadd.f32 %v254, %v253
        %256 = vst [vmem:[#allocation2] sm:$0xff] %v255
        %v257 = vld [vmem:[#allocation3] sm:$0xff]
        %v258 = vmul.f32 %v253, %v253
        %v259 = vadd.f32 %v257, %v258
        %260 = vst [vmem:[#allocation3] sm:$0xff] %v259
        // Predicated region
        $region33: #{tpu_custom_call.1} parent=23 // pred_check
          _
        $region34: #{tpu_custom_call.1} parent=23 // pred_check_branch
          %262 = sbr.rel (%p238) target = $region36
        $region35: #{tpu_custom_call.1} parent=23 // pred_region
          %v263 = vld [vmem:[#allocation2] sm:$0xff]
          %265 = vst [vmem:[#allocation1] ss:$2 sm:$0xff] %v263
          %v266 = vld.sshfl [vmem:[#allocation1] sm:$0xff pattern:$0x75316420]
          %v267 = vld.sshfl [vmem:[#allocation1 + $0x8] sm:$0xff pattern:$0x75316420]
          %vm270 = vcmask 1043456
          %v271 = vsel %vm270, %v266, 0.0
          %v272 = vsel %vm270, %v267, 0.0
          %v273 = vadd.f32 %v271, %v272
          %274 = vadd.xlane.f32.xlu0 %v273
          %v275 = vpop.xlane.xlu0 %274
          %vm276 = vcmask 3072
          %277 = vst.msk [vmem:[%s227] sm:$0xf] %vm276, %v275
          %v278 = vld [vmem:[#allocation3] sm:$0xff]
          %280 = vst [vmem:[#allocation1] ss:$2 sm:$0xff] %v278
          %v281 = vld.sshfl [vmem:[#allocation1] sm:$0xff pattern:$0x75316420]
          %v282 = vld.sshfl [vmem:[#allocation1 + $0x8] sm:$0xff pattern:$0x75316420]
          %v285 = vsel %vm270, %v281, 0.0
          %v286 = vsel %vm270, %v282, 0.0
          %v287 = vadd.f32 %v285, %v286
          %288 = vadd.xlane.f32.xlu0 %v287
          %v289 = vpop.xlane.xlu0 %288
          %290 = vst.msk [vmem:[%s235] sm:$0xf] %vm276, %v289
        $region36: #{tpu_custom_call.1} parent=23 // pred_fallthru
          _
        %p291 = scmp.lt.s32.totalorder %s23, 1
        %s292 = scalar_select %p291, %s23, 1
        %p293 = scmp.lt.s32.totalorder %s24, 1
        %s294 = scalar_select %p293, %s24, 1
        %s295 = smul.addr %s292, 2
        %s296 = sadd.s32 %s294, %s295
        %s297 = smul.addr %s296, 4
        %s298 = scalar_lea.vmem %s1, %s297
        %p299 = scmp.lt.s32.totalorder %s23, 1
        %s300 = scalar_select %p299, %s23, 1
        %p301 = scmp.lt.s32.totalorder %s24, 1
        %s302 = scalar_select %p301, %s24, 1
        %s303 = smul.addr %s300, 2
        %s304 = sadd.s32 %s302, %s303
        %s305 = smul.addr %s304, 4
        %s306 = scalar_lea.vmem %s2, %s305
        // Predicated region
        $region37: #{tpu_custom_call.1} parent=23 // pred_check
          %p307 = pneg %p95
        $region38: #{tpu_custom_call.1} parent=23 // pred_check_branch
          %309 = sbr.rel (%p307) target = $region40
        $region39: #{tpu_custom_call.1} parent=23 // pred_region
          _
        $region40: #{tpu_custom_call.1} parent=23 // pred_fallthru
          _
        // Predicated region
        $region41: #{tpu_custom_call.1} parent=23 // pred_check
          %p310 = pneg %p123
        $region42: #{tpu_custom_call.1} parent=23 // pred_check_branch
          %312 = sbr.rel (%p310) target = $region44
        $region43: #{tpu_custom_call.1} parent=23 // pred_region
          _
        $region44: #{tpu_custom_call.1} parent=23 // pred_fallthru
          _
      $region24: #{tpu_custom_call.1} parent=5 // pred_fallthru
        _
      %p313 = scmp.le.s32.totalorder 2, %s12
      // Predicated region
      $region45: #{tpu_custom_call.1} parent=5 // pred_check
        %p314 = pneg %p313
      $region46: #{tpu_custom_call.1} parent=5 // pred_check_branch
        %316 = sbr.rel (%p314) target = $region48
      $region47: #{tpu_custom_call.1} parent=5 // pred_region
        %s317 = ssub.s32 %s12, 2
        // Predicated region
        $region49: #{tpu_custom_call.1} parent=47 // pred_check
          %p318 = pneg %p101
        $region50: #{tpu_custom_call.1} parent=47 // pred_check_branch
          %320 = sbr.rel (%p318) target = $region52
        $region51: #{tpu_custom_call.1} parent=47 // pred_region
          %p321 = scmp.lt.s32.totalorder %s27, 1
          %s322 = scalar_select %p321, %s27, 1
          %p323 = scmp.lt.s32.totalorder %s28, 1
          %s324 = scalar_select %p323, %s28, 1
          %s325 = smul.addr %s322, 2
          %s326 = sadd.s32 %s324, %s325
          %s327 = smul.addr %s326, 4
          %s328 = scalar_lea.vmem %s1, %s327
        $region52: #{tpu_custom_call.1} parent=47 // pred_fallthru
          _
        // Predicated region
        $region53: #{tpu_custom_call.1} parent=47 // pred_check
          %p329 = pneg %p129
        $region54: #{tpu_custom_call.1} parent=47 // pred_check_branch
          %331 = sbr.rel (%p329) target = $region56
        $region55: #{tpu_custom_call.1} parent=47 // pred_region
          %p332 = scmp.lt.s32.totalorder %s27, 1
          %s333 = scalar_select %p332, %s27, 1
          %p334 = scmp.lt.s32.totalorder %s28, 1
          %s335 = scalar_select %p334, %s28, 1
          %s336 = smul.addr %s333, 2
          %s337 = sadd.s32 %s335, %s336
          %s338 = smul.addr %s337, 4
          %s339 = scalar_lea.vmem %s2, %s338
        $region56: #{tpu_custom_call.1} parent=47 // pred_fallthru
          _
      $region48: #{tpu_custom_call.1} parent=5 // pred_fallthru
        _
    $region6: #{tpu_custom_call.1} parent=1 // loop_footer
      %s16 = sadd.s32 1, %s12
    $region7: #{tpu_custom_call.1} parent=1 // loop_footer_branch
      %11 = sbr.rel target = $region3
    $region8: #{tpu_custom_call.1} parent=1 // loop_exit
      _
    %340 = vsyncpa [#allocation5], 1
    %s341 = scalar_lea.sflag [#allocation5], 1
    %342 = vsyncpa %s341, 1

</llo_original>
